<compile_context>
chip_gen: v7x
topology: tpu7x:2x2x1
jax: 0.10.0
libtpu: 0.0.40
codegen_flags: <defaults>
</compile_context>

<pallas_src>
import functools

import jax
import jax.numpy as jnp
from jax import lax
from jax.experimental import pallas as pl
from jax.experimental.pallas import tpu as pltpu


def _round_up(x, m):
    return ((x + m - 1) // m) * m


def _vmem_capacity_bytes():
    try:
        cap = int(pltpu.get_tpu_info().vmem_capacity_bytes)
        if cap > 0:
            return cap
    except Exception:
        pass
    return 64 << 20  # conservative (v7x per-core VMEM)


def _online_step(logits, max_logits, denom_mask, pos, j,
                 m_sc, l_sc, s_sc, c_sc, out_ref, loss_scale):
    """Online log-sum-exp update + finalize for one [tm, tk] tile.

    `pos` is either a boolean positive mask (label path) or f32 weights (mask
    path).  Accumulators (all [tm, 1] f32): running max m, rescaled exp-sum l,
    sum(pos * raw_logits) s, positive count/weight c.
    """
    @pl.when(j == 0)
    def _init():
        m_sc[...] = jnp.full_like(m_sc, -jnp.inf)
        l_sc[...] = jnp.zeros_like(l_sc)
        s_sc[...] = jnp.zeros_like(s_sc)
        c_sc[...] = jnp.zeros_like(c_sc)

    m_tile = jnp.max(max_logits, axis=1, keepdims=True)
    m_prev = m_sc[...]
    m_new = jnp.maximum(m_prev, m_tile)

    p = jnp.where(denom_mask, jnp.exp(logits - m_new), 0.0)
    l_sc[...] = jnp.exp(m_prev - m_new) * l_sc[...] + jnp.sum(p, axis=1, keepdims=True)

    if pos.dtype == jnp.bool_:
        pos_b = jnp.logical_and(pos, denom_mask)
        s_sc[...] += jnp.sum(jnp.where(pos_b, logits, 0.0), axis=1, keepdims=True)
        c_sc[...] += jnp.sum(pos_b.astype(jnp.float32), axis=1, keepdims=True)
    else:
        w = jnp.where(denom_mask, pos, 0.0)
        s_sc[...] += jnp.sum(w * logits, axis=1, keepdims=True)
        c_sc[...] += jnp.sum(w, axis=1, keepdims=True)
    m_sc[...] = m_new

    @pl.when(j == pl.num_programs(1) - 1)
    def _finalize():
        c = c_sc[...]
        c_adj = jnp.where(c < 1e-6, 1.0, c)
        log_denom = m_sc[...] + jnp.log(l_sc[...])
        # sum(mask*log_prob) = sum(mask*raw_logits) - c * log(sum exp(raw_logits))
        mean_log_prob_pos = (s_sc[...] - log_denom * c) / c_adj
        out_ref[...] = (loss_scale * mean_log_prob_pos).astype(out_ref.dtype)


def _tile_masks(i, j, tm, tk, n_valid, col_masked, logits):
    """Cheap column-validity / diagonal masks (no full-tile iotas)."""
    col_ids = j * tk + lax.broadcasted_iota(jnp.int32, (1, tk), 1)     # [1, tk]
    row_ids = i * tm + lax.broadcasted_iota(jnp.int32, (tm, 1), 0)     # [tm, 1]
    not_diag = row_ids != col_ids                                      # [tm, tk]
    if col_masked:
        col_valid = col_ids < n_valid                                  # [1, tk]
        max_logits = jnp.where(col_valid, logits, jnp.finfo(jnp.float32).min)
        denom_mask = jnp.logical_and(col_valid, not_diag)
    else:
        max_logits = logits
        denom_mask = not_diag
    return max_logits, denom_mask


def _dot_tile(q_ref, k_ref, j, tk, k_resident):
    if k_resident:
        start = pl.multiple_of(j * tk, 8)
        k_tile = k_ref[pl.ds(start, tk), :]
    else:
        k_tile = k_ref[...]
    # Contract dim 1 of both operands (no explicit transpose); f32 MXU accumulation.
    return lax.dot_general(q_ref[...], k_tile, (((1,), (1,)), ((), ())),
                           preferred_element_type=jnp.float32)


def _supcon_labels_kernel(q_ref, k_ref, lr_ref, lc_ref, out_ref,
                          m_sc, l_sc, s_sc, c_sc, *,
                          loss_scale, n_valid, tm, tk, k_resident, col_masked):
    i = pl.program_id(0)
    j = pl.program_id(1)
    logits = _dot_tile(q_ref, k_ref, j, tk, k_resident)
    max_logits, denom_mask = _tile_masks(i, j, tm, tk, n_valid, col_masked, logits)
    pos = lr_ref[...] == lc_ref[...]                      # [tm,1]==[1,tk] -> bool
    _online_step(logits, max_logits, denom_mask, pos, j,
                 m_sc, l_sc, s_sc, c_sc, out_ref, loss_scale)


def _supcon_mask_kernel(q_ref, k_ref, mask_ref, out_ref,
                        m_sc, l_sc, s_sc, c_sc, *,
                        loss_scale, n_valid, tm, tk, k_resident, col_masked):
    i = pl.program_id(0)
    j = pl.program_id(1)
    logits = _dot_tile(q_ref, k_ref, j, tk, k_resident)
    max_logits, denom_mask = _tile_masks(i, j, tm, tk, n_valid, col_masked, logits)
    pos = mask_ref[...].astype(jnp.float32)               # f32 weights
    _online_step(logits, max_logits, denom_mask, pos, j,
                 m_sc, l_sc, s_sc, c_sc, out_ref, loss_scale)


def supcon_loss(features, labels=None, mask=None, temperature=0.07,
                contrast_mode="all", base_temperature=0.07,
                compute_dtype=jnp.bfloat16, tile_m=None, tile_k=None):
    """JAX/Pallas equivalent of SupConLoss.forward (forward pass only)."""
    if features.ndim < 3:
        raise ValueError("`features` needs to be [bsz, n_views, ...], "
                         "at least 3 dimensions are required")
    if features.ndim > 3:
        features = features.reshape(features.shape[0], features.shape[1], -1)
    if labels is not None and mask is not None:
        raise ValueError("Cannot define both `labels` and `mask`")

    bsz, n_views, dim = features.shape
    n_contrast = n_views * bsz
    if contrast_mode == "all":
        n_anchor = n_contrast
    elif contrast_mode == "one":
        n_anchor = bsz
    else:
        raise ValueError("Unknown mode: {}".format(contrast_mode))

    inv_temp = 1.0 / float(temperature)
    loss_scale = -(float(temperature) / float(base_temperature))

    # contrast_feature = cat(unbind(features, dim=1)) -> view-major [N, D].
    # Anchors are the first n_anchor rows of it in both modes.
    contrast32 = jnp.swapaxes(features, 0, 1).reshape(n_contrast, dim)
    contrast32 = contrast32.astype(jnp.float32)

    itemsize = jnp.dtype(compute_dtype).itemsize
    d_pad = _round_up(dim, 128)

    # ---- column (contrast) tile: keep it large, pad N up to a tile multiple ----
    if tile_k is not None:
        tk = _round_up(max(int(tile_k), 128), 128)
    else:
        tk = 512
        while tk > 128 and 2 * tk * d_pad * itemsize > (8 << 20):
            tk //= 2
        n128 = _round_up(n_contrast, 128)
        if n128 <= 2 * tk and 2 * n128 * d_pad * itemsize <= (16 << 20):
            tk = n128                       # single column tile, no padding waste
    n_pad = _round_up(n_contrast, tk)

    # ---- row (anchor) tile ----
    a8 = _round_up(n_anchor, 8)
    if tile_m is not None:
        tm = _round_up(max(int(tile_m), 8), 8)
    else:
        tm = 256
        while tm > 8 and 2 * tm * d_pad * itemsize > (4 << 20):
            tm //= 2
        tm = min(tm, a8)
        # Keep >=2 row tiles so v7x's two TensorCores both get work.
        if a8 > 8 and -(-a8 // tm) < 2:
            tm = _round_up(-(-a8 // 2), 8)
    m_pad = _round_up(n_anchor, tm)
    n_row_tiles = m_pad // tm

    # ---- VMEM budgeting: resident K + explicit scoped-VMEM limit ----
    vmem_cap = _vmem_capacity_bytes()
    k_budget = (40 << 20) if vmem_cap >= (96 << 20) else (20 << 20)
    k_bytes = 2 * n_pad * d_pad * itemsize          # worst case: double-buffered
    k_resident = (n_row_tiles >= 2) and (k_bytes <= k_budget)

    est = (2 * tm * d_pad * itemsize                                   # Q stream
           + (k_bytes if k_resident else 2 * tk * d_pad * itemsize)    # K
           + 8 * tm * tk * 4                                           # f32 temporaries
           + 4 * tm * 128 * 4                                          # accumulators
           + (2 * tm * tk * 2 if mask is not None else 0))             # bf16 mask stream
    vmem_limit = int(min(max(est + (8 << 20), 32 << 20), (vmem_cap * 3) // 4))

    # ---- host-side prep: fold 1/temperature into Q once, cast, pad ----
    k_arr = jnp.pad(contrast32, ((0, n_pad - n_contrast), (0, d_pad - dim)))
    k_arr = k_arr.astype(compute_dtype)
    q32 = contrast32[:n_anchor] * jnp.float32(inv_temp)
    q_arr = jnp.pad(q32, ((0, m_pad - n_anchor), (0, d_pad - dim)))
    q_arr = q_arr.astype(compute_dtype)

    grid = (n_row_tiles, n_pad // tk)
    col_masked = (n_pad != n_contrast)

    q_spec = pl.BlockSpec((tm, d_pad), lambda i, j: (i, 0))
    if k_resident:
        # Constant index map -> fetched once, stays VMEM-resident; sliced in-kernel.
        k_spec = pl.BlockSpec((n_pad, d_pad), lambda i, j: (0, 0))
    else:
        k_spec = pl.BlockSpec((tk, d_pad), lambda i, j: (j, 0))
    out_spec = pl.BlockSpec((tm, 1), lambda i, j: (i, 0))
    scratch = [pltpu.VMEM((tm, 1), jnp.float32)] * 4
    cparams = pltpu.CompilerParams(
        dimension_semantics=("parallel", "arbitrary"),
        vmem_limit_bytes=vmem_limit)

    common = dict(loss_scale=loss_scale, n_valid=n_contrast, tm=tm, tk=tk,
                  k_resident=k_resident, col_masked=col_masked)

    if mask is None:
        # Positive mask computed in-kernel from labels (SimCLR == arange labels).
        if labels is None:
            labels_b = jnp.arange(bsz, dtype=jnp.int32)
        else:
            labels_b = jnp.asarray(labels).reshape(-1).astype(jnp.int32)
            if labels_b.shape[0] != bsz:
                raise ValueError("Num of labels does not match num of features")
        labels_full = jnp.tile(labels_b, (n_views,))                        # [N]
        # Padded rows are discarded and padded columns are killed by col_valid,
        # so no sentinel label values are needed.
        lab_c = jnp.pad(labels_full, (0, n_pad - n_contrast)).reshape(1, n_pad)
        lab_r = jnp.pad(labels_full[:n_anchor],
                        (0, m_pad - n_anchor)).reshape(m_pad, 1)
        kernel = functools.partial(_supcon_labels_kernel, **common)
        in_specs = [q_spec, k_spec,
                    pl.BlockSpec((tm, 1), lambda i, j: (i, 0)),
                    pl.BlockSpec((1, tk), lambda i, j: (0, j))]
        args = (q_arr, k_arr, lab_r, lab_c)
    else:
        # Fallback path for an explicit (possibly asymmetric / weighted) mask.
        mask_b = jnp.asarray(mask).astype(jnp.float32)
        reps = (n_views, n_views) if contrast_mode == "all" else (1, n_views)
        mask_full = jnp.tile(mask_b, reps)                                  # [M, N]
        mask_full = jnp.pad(mask_full, ((0, m_pad - n_anchor),
                                        (0, n_pad - n_contrast)))
        mask_full = mask_full.astype(jnp.bfloat16)      # halve the dominant stream
        kernel = functools.partial(_supcon_mask_kernel, **common)
        in_specs = [q_spec, k_spec,
                    pl.BlockSpec((tm, tk), lambda i, j: (i, j))]
        args = (q_arr, k_arr, mask_full)

    per_anchor = pl.pallas_call(
        kernel,
        out_shape=jax.ShapeDtypeStruct((m_pad, 1), jnp.float32),
        grid=grid,
        in_specs=in_specs,
        out_specs=out_spec,
        scratch_shapes=scratch,
        compiler_params=cparams,
    )(*args)

    return jnp.sum(per_anchor[:n_anchor, 0]) / jnp.float32(n_anchor)


def _supcon_ref(features, labels=None, mask=None, temperature=0.07,
                contrast_mode="all", base_temperature=0.07):
    """Pure-JAX reference mirroring the PyTorch module (for verification)."""
    bsz, n_views, dim = features.shape
    if labels is None and mask is None:
        mask_b = jnp.eye(bsz, dtype=jnp.float32)
    elif labels is not None:
        lab = labels.reshape(-1, 1)
        mask_b = (lab == lab.T).astype(jnp.float32)
    else:
        mask_b = mask.astype(jnp.float32)
    cf = jnp.swapaxes(features, 0, 1).reshape(n_views * bsz, dim).astype(jnp.float32)
    if contrast_mode == "one":
        anchor, a_count = cf[:bsz], 1
    else:
        anchor, a_count = cf, n_views
    adc = anchor @ cf.T / temperature
    logits = adc - jnp.max(adc, axis=1, keepdims=True)
    mask_f = jnp.tile(mask_b, (a_count, n_views))
    n_rows = a_count * bsz
    idx = jnp.arange(n_rows)
    logits_mask = jnp.ones_like(mask_f).at[idx, idx].set(0.0)
    mask_f = mask_f * logits_mask
    exp_logits = jnp.exp(logits) * logits_mask
    log_prob = logits - jnp.log(jnp.sum(exp_logits, axis=1, keepdims=True))
    mpp = jnp.sum(mask_f, axis=1)
    mpp = jnp.where(mpp < 1e-6, 1.0, mpp)
    mlpp = jnp.sum(mask_f * log_prob, axis=1) / mpp
    loss = -(temperature / base_temperature) * mlpp
    return jnp.mean(loss)


if __name__ == "__main__":
    key = jax.random.PRNGKey(0)
    bsz, n_views, dim = 8, 2, 32

    kf, kl, kf2, kl2 = jax.random.split(key, 4)
    feats = jax.random.normal(kf, (bsz, n_views, dim), dtype=jnp.float32)
    feats = feats / jnp.linalg.norm(feats, axis=-1, keepdims=True)
    labels = jax.random.randint(kl, (bsz,), 0, 3)
    ref = _supcon_ref(feats, labels=labels)

    # 1) supervised, f32 compute (tight tolerance)
    out = jax.block_until_ready(
        supcon_loss(feats, labels=labels, compute_dtype=jnp.float32))
    assert jnp.allclose(out, ref, atol=1e-3, rtol=1e-3), (out, ref)

    # 2) default path: bf16 features on the MXU (f32 accumulation) -- looser tol
    out_bf16 = jax.block_until_ready(supcon_loss(feats, labels=labels))
    assert jnp.allclose(out_bf16, ref, atol=8e-2, rtol=8e-2), (out_bf16, ref)

    # 3) SimCLR degenerate case (labels=None, mask=None)
    out_simclr = jax.block_until_ready(
        supcon_loss(feats, compute_dtype=jnp.float32))
    ref_simclr = _supcon_ref(feats)
    assert jnp.allclose(out_simclr, ref_simclr, atol=1e-3, rtol=1e-3), (out_simclr, ref_simclr)

    # 4) explicit-mask fallback path (mask == label equality) must match (1)
    mask_b = (labels.reshape(-1, 1) == labels.reshape(1, -1)).astype(jnp.float32)
    out_mask = jax.block_until_ready(
        supcon_loss(feats, mask=mask_b, compute_dtype=jnp.float32))
    assert jnp.allclose(out_mask, ref, atol=1e-3, rtol=1e-3), (out_mask, ref)

    # 5) contrast_mode='one' (single row tile -> streamed-K path)
    out_one = jax.block_until_ready(
        supcon_loss(feats, labels=labels, contrast_mode="one",
                    compute_dtype=jnp.float32))
    ref_one = _supcon_ref(feats, labels=labels, contrast_mode="one")
    assert jnp.allclose(out_one, ref_one, atol=1e-3, rtol=1e-3), (out_one, ref_one)

    # 6) multi-tile grid with a partially-padded last column tile and resident K
    #    (forced small tiles to exercise the online-LSE across several steps)
    bsz2, n_views2, dim2 = 72, 2, 48
    feats2 = jax.random.normal(kf2, (bsz2, n_views2, dim2), dtype=jnp.float32)
    feats2 = feats2 / jnp.linalg.norm(feats2, axis=-1, keepdims=True)
    labels2 = jax.random.randint(kl2, (bsz2,), 0, 5)
    ref2 = _supcon_ref(feats2, labels=labels2)
    out2 = jax.block_until_ready(
        supcon_loss(feats2, labels=labels2, compute_dtype=jnp.float32,
                    tile_m=64, tile_k=128))
    assert jnp.allclose(out2, ref2, atol=1e-3, rtol=1e-3), (out2, ref2)

    print("KERNEL_OK")
</pallas_src>

<mosaic_0001>
module attributes {stable_mosaic.version = 11 : i64} {
  func.func @_supcon_labels_kernel(%arg0: i32, %arg1: i32, %arg2: memref<8x128xf32, #tpu.memory_space<vmem>>, %arg3: memref<128x128xf32, #tpu.memory_space<vmem>>, %arg4: memref<8x1xi32, #tpu.memory_space<vmem>>, %arg5: memref<1x128xi32, #tpu.memory_space<vmem>>, %arg6: memref<8x1xf32, #tpu.memory_space<vmem>>, %arg7: memref<8x1xf32, #tpu.memory_space<vmem>>, %arg8: memref<8x1xf32, #tpu.memory_space<vmem>>, %arg9: memref<8x1xf32, #tpu.memory_space<vmem>>, %arg10: memref<8x1xf32, #tpu.memory_space<vmem>>) attributes {dimension_semantics = [#tpu.dimension_semantics<parallel>, #tpu.dimension_semantics<arbitrary>], iteration_bounds = array<i64: 2, 1>, scalar_prefetch = 0 : i64, scratch_operands = 4 : i64, tpu.core_type = #tpu.core_type<tc>, window_params = [{transform_indices = @transform_0, window_bounds = array<i64: 8, 128>}, {pipeline_mode = #tpu.pipeline_mode<synchronous>, transform_indices = @transform_1, window_bounds = array<i64: 128, 128>}, {transform_indices = @transform_2, window_bounds = array<i64: 8, 1>}, {transform_indices = @transform_3, window_bounds = array<i64: 1, 128>}, {transform_indices = @transform_4, window_bounds = array<i64: 8, 1>}]} {
    %c128_i32 = arith.constant 128 : i32
    %0 = arith.muli %arg1, %c128_i32 : i32
    %1 = tpu.assume_multiple %0, 8 : i32
    %2 = arith.index_cast %1 : i32 to index
    %c0 = arith.constant 0 : index
    %3 = vector.load %arg3[%2, %c0] : memref<128x128xf32, #tpu.memory_space<vmem>>, vector<128x128xf32>
    %c0_0 = arith.constant 0 : index
    %c0_1 = arith.constant 0 : index
    %4 = vector.load %arg2[%c0_0, %c0_1] : memref<8x128xf32, #tpu.memory_space<vmem>>, vector<8x128xf32>
    %cst = arith.constant dense<0.000000e+00> : vector<8x128xf32>
    %5 = tpu.matmul %4, %3, %cst {dimension_numbers = #tpu.dot_dimension_numbers<[1], [1], [0], [0], [0, 0, 1, 0], [], []>} : vector<8x128xf32>, vector<128x128xf32>, vector<8x128xf32> -> vector<8x128xf32>
    %c128_i32_2 = arith.constant 128 : i32
    %6 = arith.muli %arg1, %c128_i32_2 : i32
    %7 = tpu.iota {dimensions = array<i32: 1>} : vector<1x128xi32>
    %8 = vector.broadcast %6 : i32 to vector<1x128xi32>
    %9 = arith.addi %8, %7 : vector<1x128xi32>
    %c8_i32 = arith.constant 8 : i32
    %10 = arith.muli %arg0, %c8_i32 : i32
    %11 = tpu.iota {dimensions = array<i32: 0>} : vector<8x1xi32>
    %12 = vector.broadcast %10 : i32 to vector<8x1xi32>
    %13 = arith.addi %12, %11 : vector<8x1xi32>
    %14 = vector.broadcast %13 : vector<8x1xi32> to vector<8x128xi32>
    %15 = vector.broadcast %9 : vector<1x128xi32> to vector<8x128xi32>
    %16 = arith.cmpi ne, %14, %15 : vector<8x128xi32>
    %c16_i32 = arith.constant 16 : i32
    %17 = vector.broadcast %c16_i32 : i32 to vector<1x128xi32>
    %18 = arith.cmpi slt, %9, %17 : vector<1x128xi32>
    %cst_3 = arith.constant -3.40282347E+38 : f32
    %19 = vector.shape_cast %18 : vector<1x128xi1> to vector<1x128xi1>
    %20 = vector.broadcast %19 : vector<1x128xi1> to vector<8x128xi1>
    %21 = vector.broadcast %cst_3 : f32 to vector<8x128xf32>
    %22 = arith.select %20, %5, %21 : vector<8x128xi1>, vector<8x128xf32>
    %23 = vector.broadcast %18 : vector<1x128xi1> to vector<8x128xi1>
    %24 = arith.andi %23, %16 : vector<8x128xi1>
    %c0_4 = arith.constant 0 : index
    %c0_5 = arith.constant 0 : index
    %25 = vector.load %arg4[%c0_4, %c0_5] : memref<8x1xi32, #tpu.memory_space<vmem>>, vector<8x1xi32>
    %c0_6 = arith.constant 0 : index
    %c0_7 = arith.constant 0 : index
    %26 = vector.load %arg5[%c0_6, %c0_7] : memref<1x128xi32, #tpu.memory_space<vmem>>, vector<1x128xi32>
    %27 = vector.broadcast %25 : vector<8x1xi32> to vector<8x128xi32>
    %28 = vector.broadcast %26 : vector<1x128xi32> to vector<8x128xi32>
    %29 = arith.cmpi eq, %27, %28 : vector<8x128xi32>
    %c0_i32 = arith.constant 0 : i32
    %30 = arith.cmpi eq, %arg1, %c0_i32 : i32
    %31 = arith.extui %30 : i1 to i32
    %c0_i32_8 = arith.constant 0 : i32
    %32 = arith.cmpi ne, %31, %c0_i32_8 : i32
    scf.if %32 {
      %cst_33 = arith.constant 0xFF800000 : f32
      %69 = vector.broadcast %cst_33 : f32 to vector<8x1xf32>
      %c0_34 = arith.constant 0 : index
      %c0_35 = arith.constant 0 : index
      %70 = vector.load %arg7[%c0_34, %c0_35] : memref<8x1xf32, #tpu.memory_space<vmem>>, vector<8x1xf32>
      tpu.vector_store %arg7[%c0_34, %c0_35], %69 {strides = array<i32>} : memref<8x1xf32, #tpu.memory_space<vmem>>, vector<8x1xf32>,
      %cst_36 = arith.constant 0.000000e+00 : f32
      %71 = vector.broadcast %cst_36 : f32 to vector<8x1xf32>
      %c0_37 = arith.constant 0 : index
      %c0_38 = arith.constant 0 : index
      %72 = vector.load %arg8[%c0_37, %c0_38] : memref<8x1xf32, #tpu.memory_space<vmem>>, vector<8x1xf32>
      tpu.vector_store %arg8[%c0_37, %c0_38], %71 {strides = array<i32>} : memref<8x1xf32, #tpu.memory_space<vmem>>, vector<8x1xf32>,
      %cst_39 = arith.constant 0.000000e+00 : f32
      %73 = vector.broadcast %cst_39 : f32 to vector<8x1xf32>
      %c0_40 = arith.constant 0 : index
      %c0_41 = arith.constant 0 : index
      %74 = vector.load %arg9[%c0_40, %c0_41] : memref<8x1xf32, #tpu.memory_space<vmem>>, vector<8x1xf32>
      tpu.vector_store %arg9[%c0_40, %c0_41], %73 {strides = array<i32>} : memref<8x1xf32, #tpu.memory_space<vmem>>, vector<8x1xf32>,
      %cst_42 = arith.constant 0.000000e+00 : f32
      %75 = vector.broadcast %cst_42 : f32 to vector<8x1xf32>
      %c0_43 = arith.constant 0 : index
      %c0_44 = arith.constant 0 : index
      %76 = vector.load %arg10[%c0_43, %c0_44] : memref<8x1xf32, #tpu.memory_space<vmem>>, vector<8x1xf32>
      tpu.vector_store %arg10[%c0_43, %c0_44], %75 {strides = array<i32>} : memref<8x1xf32, #tpu.memory_space<vmem>>, vector<8x1xf32>,
    } else {
    }
    %cst_9 = arith.constant dense<0xFF800000> : vector<8xf32>
    %33 = vector.multi_reduction <maximumf>, %22, %cst_9 [1] : vector<8x128xf32> to vector<8xf32>
    %34 = vector.shape_cast %33 : vector<8xf32> to vector<8x1xf32>
    %c0_10 = arith.constant 0 : index
    %c0_11 = arith.constant 0 : index
    %35 = vector.load %arg7[%c0_10, %c0_11] : memref<8x1xf32, #tpu.memory_space<vmem>>, vector<8x1xf32>
    %36 = arith.maximumf %35, %34 : vector<8x1xf32>
    %37 = vector.broadcast %36 : vector<8x1xf32> to vector<8x128xf32>
    %38 = arith.subf %5, %37 : vector<8x128xf32>
    %39 = math.exp %38 : vector<8x128xf32>
    %cst_12 = arith.constant 0.000000e+00 : f32
    %40 = vector.broadcast %cst_12 : f32 to vector<8x128xf32>
    %41 = arith.select %24, %39, %40 : vector<8x128xi1>, vector<8x128xf32>
    %42 = arith.subf %35, %36 : vector<8x1xf32>
    %43 = math.exp %42 : vector<8x1xf32>
    %c0_13 = arith.constant 0 : index
    %c0_14 = arith.constant 0 : index
    %44 = vector.load %arg8[%c0_13, %c0_14] : memref<8x1xf32, #tpu.memory_space<vmem>>, vector<8x1xf32>
    %45 = arith.mulf %43, %44 : vector<8x1xf32>
    %cst_15 = arith.constant dense<0.000000e+00> : vector<8xf32>
    %46 = vector.multi_reduction <add>, %41, %cst_15 [1] : vector<8x128xf32> to vector<8xf32>
    %47 = vector.shape_cast %46 : vector<8xf32> to vector<8x1xf32>
    %48 = arith.addf %45, %47 : vector<8x1xf32>
    %c0_16 = arith.constant 0 : index
    %c0_17 = arith.constant 0 : index
    %49 = vector.load %arg8[%c0_16, %c0_17] : memref<8x1xf32, #tpu.memory_space<vmem>>, vector<8x1xf32>
    tpu.vector_store %arg8[%c0_16, %c0_17], %48 {strides = array<i32>} : memref<8x1xf32, #tpu.memory_space<vmem>>, vector<8x1xf32>,
    %50 = arith.andi %29, %24 : vector<8x128xi1>
    %c0_18 = arith.constant 0 : index
    %c0_19 = arith.constant 0 : index
    %51 = vector.load %arg9[%c0_18, %c0_19] : memref<8x1xf32, #tpu.memory_space<vmem>>, vector<8x1xf32>
    %cst_20 = arith.constant 0.000000e+00 : f32
    %52 = vector.broadcast %cst_20 : f32 to vector<8x128xf32>
    %53 = arith.select %50, %5, %52 : vector<8x128xi1>, vector<8x128xf32>
    %cst_21 = arith.constant dense<0.000000e+00> : vector<8xf32>
    %54 = vector.multi_reduction <add>, %53, %cst_21 [1] : vector<8x128xf32> to vector<8xf32>
    %55 = vector.shape_cast %54 : vector<8xf32> to vector<8x1xf32>
    %56 = arith.addf %51, %55 : vector<8x1xf32>
    %c0_22 = arith.constant 0 : index
    %c0_23 = arith.constant 0 : index
    %57 = vector.load %arg9[%c0_22, %c0_23] : memref<8x1xf32, #tpu.memory_space<vmem>>, vector<8x1xf32>
    tpu.vector_store %arg9[%c0_22, %c0_23], %56 {strides = array<i32>} : memref<8x1xf32, #tpu.memory_space<vmem>>, vector<8x1xf32>,
    %c0_24 = arith.constant 0 : index
    %c0_25 = arith.constant 0 : index
    %58 = vector.load %arg10[%c0_24, %c0_25] : memref<8x1xf32, #tpu.memory_space<vmem>>, vector<8x1xf32>
    %59 = arith.extui %50 : vector<8x128xi1> to vector<8x128xi32>
    %60 = arith.sitofp %59 : vector<8x128xi32> to vector<8x128xf32>
    %cst_26 = arith.constant dense<0.000000e+00> : vector<8xf32>
    %61 = vector.multi_reduction <add>, %60, %cst_26 [1] : vector<8x128xf32> to vector<8xf32>
    %62 = vector.shape_cast %61 : vector<8xf32> to vector<8x1xf32>
    %63 = arith.addf %58, %62 : vector<8x1xf32>
    %c0_27 = arith.constant 0 : index
    %c0_28 = arith.constant 0 : index
    %64 = vector.load %arg10[%c0_27, %c0_28] : memref<8x1xf32, #tpu.memory_space<vmem>>, vector<8x1xf32>
    tpu.vector_store %arg10[%c0_27, %c0_28], %63 {strides = array<i32>} : memref<8x1xf32, #tpu.memory_space<vmem>>, vector<8x1xf32>,
    %c0_29 = arith.constant 0 : index
    %c0_30 = arith.constant 0 : index
    %65 = vector.load %arg7[%c0_29, %c0_30] : memref<8x1xf32, #tpu.memory_space<vmem>>, vector<8x1xf32>
    tpu.vector_store %arg7[%c0_29, %c0_30], %36 {strides = array<i32>} : memref<8x1xf32, #tpu.memory_space<vmem>>, vector<8x1xf32>,
    %c0_i32_31 = arith.constant 0 : i32
    %66 = arith.cmpi eq, %arg1, %c0_i32_31 : i32
    %67 = arith.extui %66 : i1 to i32
    %c0_i32_32 = arith.constant 0 : i32
    %68 = arith.cmpi ne, %67, %c0_i32_32 : i32
    scf.if %68 {
      %c0_33 = arith.constant 0 : index
      %c0_34 = arith.constant 0 : index
      %69 = vector.load %arg10[%c0_33, %c0_34] : memref<8x1xf32, #tpu.memory_space<vmem>>, vector<8x1xf32>
      %cst_35 = arith.constant 9.99999997E-7 : f32
      %70 = vector.broadcast %cst_35 : f32 to vector<8x1xf32>
      %71 = arith.cmpf olt, %69, %70 : vector<8x1xf32>
      %cst_36 = arith.constant 1.000000e+00 : f32
      %72 = vector.broadcast %cst_36 : f32 to vector<8x1xf32>
      %73 = arith.select %71, %72, %69 : vector<8x1xi1>, vector<8x1xf32>
      %c0_37 = arith.constant 0 : index
      %c0_38 = arith.constant 0 : index
      %74 = vector.load %arg7[%c0_37, %c0_38] : memref<8x1xf32, #tpu.memory_space<vmem>>, vector<8x1xf32>
      %c0_39 = arith.constant 0 : index
      %c0_40 = arith.constant 0 : index
      %75 = vector.load %arg8[%c0_39, %c0_40] : memref<8x1xf32, #tpu.memory_space<vmem>>, vector<8x1xf32>
      %76 = math.log %75 : vector<8x1xf32>
      %77 = arith.addf %74, %76 : vector<8x1xf32>
      %c0_41 = arith.constant 0 : index
      %c0_42 = arith.constant 0 : index
      %78 = vector.load %arg9[%c0_41, %c0_42] : memref<8x1xf32, #tpu.memory_space<vmem>>, vector<8x1xf32>
      %79 = arith.mulf %77, %69 : vector<8x1xf32>
      %80 = arith.subf %78, %79 : vector<8x1xf32>
      %81 = arith.divf %80, %73 : vector<8x1xf32>
      %cst_43 = arith.constant -1.000000e+00 : f32
      %82 = vector.broadcast %cst_43 : f32 to vector<8x1xf32>
      %83 = arith.mulf %82, %81 : vector<8x1xf32>
      %c0_44 = arith.constant 0 : index
      %c0_45 = arith.constant 0 : index
      %84 = vector.load %arg6[%c0_44, %c0_45] : memref<8x1xf32, #tpu.memory_space<vmem>>, vector<8x1xf32>
      tpu.vector_store %arg6[%c0_44, %c0_45], %83 {strides = array<i32>} : memref<8x1xf32, #tpu.memory_space<vmem>>, vector<8x1xf32>,
    } else {
    }
    return
  }
  func.func @transform_0(%arg0: i32, %arg1: i32) -> (i32, i32) {
    %c0_i32 = arith.constant 0 : i32
    %c0_i32_0 = arith.constant 0 : i32
    return %arg0, %c0_i32 : i32, i32
  }
  func.func @transform_1(%arg0: i32, %arg1: i32) -> (i32, i32) {
    %c0_i32 = arith.constant 0 : i32
    %c0_i32_0 = arith.constant 0 : i32
    %c0_i32_1 = arith.constant 0 : i32
    return %c0_i32, %c0_i32_0 : i32, i32
  }
  func.func @transform_2(%arg0: i32, %arg1: i32) -> (i32, i32) {
    %c0_i32 = arith.constant 0 : i32
    %c0_i32_0 = arith.constant 0 : i32
    return %arg0, %c0_i32 : i32, i32
  }
  func.func @transform_3(%arg0: i32, %arg1: i32) -> (i32, i32) {
    %c0_i32 = arith.constant 0 : i32
    %c0_i32_0 = arith.constant 0 : i32
    return %c0_i32, %arg1 : i32, i32
  }
  func.func @transform_4(%arg0: i32, %arg1: i32) -> (i32, i32) {
    %c0_i32 = arith.constant 0 : i32
    %c0_i32_0 = arith.constant 0 : i32
    return %arg0, %c0_i32 : i32, i32
  }
}

</mosaic_0001>

<llo_original>
// kernel: tpu_custom_call.1
$region0: #{tpu_custom_call.1}
  #allocation0 [shape = 'u32[]', space=smem, size = 0x4, offset = 0x4, fixed_abs, tag = 'smem constant byte address 0x4 - core index']
  #allocation1 [shape = 'u32[144,128]{1,0:T(1,128)}', space=vmem, size = 0x12000, scoped, tag = 'internal scratch']
  #allocation2 [shape = 'f32[8,1]{1,0:T(8,128)}', space=vmem, size = 0x1000, scoped, tag = 'scratch operand']
  #allocation3 [shape = 'f32[8,1]{1,0:T(8,128)}', space=vmem, size = 0x1000, scoped, tag = 'scratch operand']
  #allocation4 [shape = 'f32[8,1]{1,0:T(8,128)}', space=vmem, size = 0x1000, scoped, tag = 'scratch operand']
  #allocation5 [shape = 'f32[8,1]{1,0:T(8,128)}', space=vmem, size = 0x1000, scoped, tag = 'scratch operand']
  %s0 = inlined_call_operand.vmem [shape: f32[16,128], index: 0, kind: input, shape index: {}]
  %s1 = inlined_call_operand.hbm [shape: f32[128,128], index: 1, kind: input, shape index: {}]
  %s2 = inlined_call_operand.vmem [shape: s32[16,1], index: 2, kind: input, shape index: {}]
  %s3 = inlined_call_operand.vmem [shape: s32[1,128], index: 3, kind: input, shape index: {}]
  %s4 = inlined_call_operand.vmem [shape: f32[16,1], index: 4, kind: output, shape index: {}]
  %s5 = sld [smem:[#allocation0]]
  $region61: #{tpu_custom_call.1} parent=0
    _
  %s7 = ssub.s32 1, %s5
  %s8 = scalar_select 0, %s7, %s5
  $region1: #{tpu_custom_call.1} parent=0
    #allocation6 [shape = 'u8[65536]{0}', space=vmem, size = 0x10000, scoped, tag = 'input window, operand 1, single buffered']
    #allocation7 [shape = 's32[2]{0}', space=sflag, size = 0x8, scoped, tag = 'scoped memory for tpu_custom_call.1']
    %9 = vsyncpa [#allocation7], 0
    loop: start=0, step=1, limit=4
    $region2: #{tpu_custom_call.1} parent=1 // loop_pre_header
      _
    $region3: #{tpu_custom_call.1} parent=1 // loop_header
      %s11 = sphi 0, %s15
      %p12 = scmp.ge.s32.totalorder %s11, 4
      %s18 = sphi 0, %s30
      %s19 = sphi 0, %s26
      %s20 = sphi 0, %s18
      %s21 = sphi 0, %s19
      %s22 = sphi 0, %s20
      %s23 = sphi 0, %s21
      %s33 = sphi 0, %s35
      %s36 = sphi 0, %s33
      %s37 = sphi 0, %s36
      %s53 = sphi 0, %s37
      %s57 = sphi 0, %s57
      %s59 = sphi 0, %s57
      %s60 = sphi 0, %s59
      %s74 = sphi 0, %s60
      %s80 = sphi 0, %s82
      %s83 = sphi 0, %s80
      %s84 = sphi 0, %s83
      %s100 = sphi 0, %s84
      %s106 = sphi 0, %s108
      %s109 = sphi 0, %s106
      %s110 = sphi 0, %s109
      %s126 = sphi 0, %s110
      %s132 = sphi 0, %s134
      %s135 = sphi 0, %s132
      %s136 = sphi 0, %s135
      %s152 = sphi 0, %s136
    $region4: #{tpu_custom_call.1} parent=1 // loop_header_branch
      %14 = sbr.rel (%p12) target = $region8
    $region5: #{tpu_custom_call.1} parent=1 // loop_body
      %s16 = ssub.s32 %s11, 1
      %s17 = ssub.s32 %s11, 2
      %s24 = sadd.s32 1, %s19
      %p25 = scmp.ge.s32.totalorder %s24, 1
      %s26 = scalar_select %p25, 0, %s24
      %s27 = sadd.s32 1, %s18
      %s28 = scalar_select %p25, %s27, %s18
      %p29 = scmp.ge.s32.totalorder %s28, 2
      %s30 = scalar_select %p29, 0, %s28
      %s31 = ssub.s32 %s18, %s30
      %p32 = scmp.eq.s32.totalorder %s31, 0
      %s34 = sadd.s32 %s33, 1
      %s35 = scalar_select %p32, %s33, %s34
      %p38 = pneg %p32
      %p39 = scmp.eq.s32.totalorder %s11, 1
      %p40 = por %p38, %p39
      %p41 = scmp.ne.s32.totalorder %s33, %s36
      %p42 = scmp.eq.s32.totalorder %s11, 0
      %p43 = por %p41, %p42
      %p44 = scmp.ne.s32.totalorder %s33, %s36
      %p45 = scmp.eq.s32.totalorder %s16, 1
      %p46 = por %p44, %p45
      %p47 = scmp.ne.s32.totalorder %s36, %s37
      %p48 = scmp.eq.s32.totalorder %s16, 0
      %p49 = por %p47, %p48
      %p50 = scmp.ne.s32.totalorder %s36, %s37
      %p51 = scmp.eq.s32.totalorder %s17, 1
      %p52 = por %p50, %p51
      %p54 = scmp.ne.s32.totalorder %s37, %s53
      %p55 = scmp.eq.s32.totalorder %s17, 0
      %p56 = por %p54, %p55
      %s58 = sadd.s32 %s57, 1
      %p61 = scmp.eq.s32.totalorder %s11, 1
      %p62 = scmp.ne.s32.totalorder %s57, %s59
      %p63 = scmp.eq.s32.totalorder %s11, 0
      %p64 = por %p62, %p63
      %p65 = scmp.ne.s32.totalorder %s57, %s59
      %p66 = scmp.eq.s32.totalorder %s16, 1
      %p67 = por %p65, %p66
      %p68 = scmp.ne.s32.totalorder %s59, %s60
      %p69 = scmp.eq.s32.totalorder %s16, 0
      %p70 = por %p68, %p69
      %p71 = scmp.ne.s32.totalorder %s59, %s60
      %p72 = scmp.eq.s32.totalorder %s17, 1
      %p73 = por %p71, %p72
      %p75 = scmp.ne.s32.totalorder %s60, %s74
      %p76 = scmp.eq.s32.totalorder %s17, 0
      %p77 = por %p75, %p76
      %s78 = ssub.s32 %s18, %s30
      %p79 = scmp.eq.s32.totalorder %s78, 0
      %s81 = sadd.s32 %s80, 1
      %s82 = scalar_select %p79, %s80, %s81
      %p85 = pneg %p79
      %p86 = scmp.eq.s32.totalorder %s11, 1
      %p87 = por %p85, %p86
      %p88 = scmp.ne.s32.totalorder %s80, %s83
      %p89 = scmp.eq.s32.totalorder %s11, 0
      %p90 = por %p88, %p89
      %p91 = scmp.ne.s32.totalorder %s80, %s83
      %p92 = scmp.eq.s32.totalorder %s16, 1
      %p93 = por %p91, %p92
      %p94 = scmp.ne.s32.totalorder %s83, %s84
      %p95 = scmp.eq.s32.totalorder %s16, 0
      %p96 = por %p94, %p95
      %p97 = scmp.ne.s32.totalorder %s83, %s84
      %p98 = scmp.eq.s32.totalorder %s17, 1
      %p99 = por %p97, %p98
      %p101 = scmp.ne.s32.totalorder %s84, %s100
      %p102 = scmp.eq.s32.totalorder %s17, 0
      %p103 = por %p101, %p102
      %s104 = ssub.s32 %s19, %s26
      %p105 = scmp.eq.s32.totalorder %s104, 0
      %s107 = sadd.s32 %s106, 1
      %s108 = scalar_select %p105, %s106, %s107
      %p111 = pneg %p105
      %p112 = scmp.eq.s32.totalorder %s11, 1
      %p113 = por %p111, %p112
      %p114 = scmp.ne.s32.totalorder %s106, %s109
      %p115 = scmp.eq.s32.totalorder %s11, 0
      %p116 = por %p114, %p115
      %p117 = scmp.ne.s32.totalorder %s106, %s109
      %p118 = scmp.eq.s32.totalorder %s16, 1
      %p119 = por %p117, %p118
      %p120 = scmp.ne.s32.totalorder %s109, %s110
      %p121 = scmp.eq.s32.totalorder %s16, 0
      %p122 = por %p120, %p121
      %p123 = scmp.ne.s32.totalorder %s109, %s110
      %p124 = scmp.eq.s32.totalorder %s17, 1
      %p125 = por %p123, %p124
      %p127 = scmp.ne.s32.totalorder %s110, %s126
      %p128 = scmp.eq.s32.totalorder %s17, 0
      %p129 = por %p127, %p128
      %s130 = ssub.s32 %s18, %s30
      %p131 = scmp.eq.s32.totalorder %s130, 0
      %s133 = sadd.s32 %s132, 1
      %s134 = scalar_select %p131, %s132, %s133
      %p137 = pneg %p131
      %p138 = scmp.eq.s32.totalorder %s11, 1
      %p139 = por %p137, %p138
      %p140 = scmp.ne.s32.totalorder %s132, %s135
      %p141 = scmp.eq.s32.totalorder %s11, 0
      %p142 = por %p140, %p141
      %p143 = scmp.ne.s32.totalorder %s132, %s135
      %p144 = scmp.eq.s32.totalorder %s16, 1
      %p145 = por %p143, %p144
      %p146 = scmp.ne.s32.totalorder %s135, %s136
      %p147 = scmp.eq.s32.totalorder %s16, 0
      %p148 = por %p146, %p147
      %p149 = scmp.ne.s32.totalorder %s135, %s136
      %p150 = scmp.eq.s32.totalorder %s17, 1
      %p151 = por %p149, %p150
      %p153 = scmp.ne.s32.totalorder %s136, %s152
      %p154 = scmp.eq.s32.totalorder %s17, 0
      %p155 = por %p153, %p154
      %p156 = scmp.le.s32.totalorder 1, %s11
      %p157 = scmp.lt.s32.totalorder %s11, 3
      %p158 = pnand %p156, %p157
      %p159 = pneg %p158
      // Predicated region
      $region9: #{tpu_custom_call.1} parent=5 // pred_check
        _
      $region10: #{tpu_custom_call.1} parent=5 // pred_check_branch
        %161 = sbr.rel (%p158) target = $region12
      $region11: #{tpu_custom_call.1} parent=5 // pred_region
        %s162 = ssub.s32 %s11, 1
        // Predicated region
        $region13: #{tpu_custom_call.1} parent=11 // pred_check
          %p163 = pneg %p70
        $region14: #{tpu_custom_call.1} parent=11 // pred_check_branch
          %165 = sbr.rel (%p163) target = $region16
        $region15: #{tpu_custom_call.1} parent=11 // pred_region
          %s167 = ssub.s32 2048, 2048
          %168 = vsyncadd [#allocation7], %s167
          %s169 = sshll.u32 [#allocation6], 4
          %s170 = int_to_ptr.vmem [resolvable:$true] %s169
          %175 = dma.hbm_to_vmem [thread:$0]  %s1, 2048, %s170, [#allocation7], 128, 128, 8
        $region16: #{tpu_custom_call.1} parent=11 // pred_fallthru
          _
        // Predicated region
        $region17: #{tpu_custom_call.1} parent=11 // pred_check
          %p176 = pneg %p122
        $region18: #{tpu_custom_call.1} parent=11 // pred_check_branch
          %178 = sbr.rel (%p176) target = $region20
        $region19: #{tpu_custom_call.1} parent=11 // pred_region
          %p179 = scmp.lt.s32.totalorder %s21, 0
          %s180 = scalar_select %p179, %s21, 0
          %s181 = scalar_lea.vmem %s3, %s180
        $region20: #{tpu_custom_call.1} parent=11 // pred_fallthru
          _
      $region12: #{tpu_custom_call.1} parent=5 // pred_fallthru
        _
      %p182 = scmp.lt.s32.totalorder %s11, 2
      // Predicated region
      $region21: #{tpu_custom_call.1} parent=5 // pred_check
        %p183 = pneg %p182
      $region22: #{tpu_custom_call.1} parent=5 // pred_check_branch
        %185 = sbr.rel (%p183) target = $region24
      $region23: #{tpu_custom_call.1} parent=5 // pred_region
        // Predicated region
        $region25: #{tpu_custom_call.1} parent=23 // pred_check
          %p186 = pneg %p43
        $region26: #{tpu_custom_call.1} parent=23 // pred_check_branch
          %188 = sbr.rel (%p186) target = $region28
        $region27: #{tpu_custom_call.1} parent=23 // pred_region
          %p189 = scmp.lt.s32.totalorder %s18, 1
          %s190 = scalar_select %p189, %s18, 1
          %s191 = smul.addr %s190, 8
          %s192 = scalar_lea.vmem %s0, %s191
        $region28: #{tpu_custom_call.1} parent=23 // pred_fallthru
          _
        // Predicated region
        $region29: #{tpu_custom_call.1} parent=23 // pred_check
          %p193 = pneg %p90
        $region30: #{tpu_custom_call.1} parent=23 // pred_check_branch
          %195 = sbr.rel (%p193) target = $region32
        $region31: #{tpu_custom_call.1} parent=23 // pred_region
          %p196 = scmp.lt.s32.totalorder %s18, 1
          %s197 = scalar_select %p196, %s18, 1
          %s198 = smul.addr %s197, 8
          %s199 = scalar_lea.vmem %s2, %s198
        $region32: #{tpu_custom_call.1} parent=23 // pred_fallthru
          _
      $region24: #{tpu_custom_call.1} parent=5 // pred_fallthru
        _
      %p200 = scmp.le.s32.totalorder 1, %s11
      %p201 = scmp.lt.s32.totalorder %s11, 3
      %p202 = pnand %p200, %p201
      %p203 = pneg %p202
      // Predicated region
      $region33: #{tpu_custom_call.1} parent=5 // pred_check
        _
      $region34: #{tpu_custom_call.1} parent=5 // pred_check_branch
        %205 = sbr.rel (%p202) target = $region36
      $region35: #{tpu_custom_call.1} parent=5 // pred_region
        %s206 = ssub.s32 %s11, 1
        // Predicated region
        $region37: #{tpu_custom_call.1} parent=35 // pred_check
          %p207 = pneg %p70
        $region38: #{tpu_custom_call.1} parent=35 // pred_check_branch
          %209 = sbr.rel (%p207) target = $region40
        $region39: #{tpu_custom_call.1} parent=35 // pred_region
          %210 = dma.done [#allocation7], 2048
        $region40: #{tpu_custom_call.1} parent=35 // pred_fallthru
          _
        %p211 = scmp.lt.s32.totalorder %s20, 1
        %s212 = scalar_select %p211, %s20, 1
        %s213 = smul.addr %s212, 8
        %s214 = scalar_lea.vmem %s0, %s213
        %p215 = pneg %p49
        %p216 = pneg %p46
        %p217 = pneg %p70
        %p218 = pneg %p67
        %p219 = scmp.lt.s32.totalorder %s20, 1
        %s220 = scalar_select %p219, %s20, 1
        %s221 = smul.addr %s220, 8
        %s222 = scalar_lea.vmem %s2, %s221
        %p223 = pneg %p96
        %p224 = pneg %p93
        %p225 = scmp.lt.s32.totalorder %s21, 0
        %s226 = scalar_select %p225, %s21, 0
        %s227 = scalar_lea.vmem %s3, %s226
        %p228 = pneg %p122
        %p229 = pneg %p119
        %p230 = pneg %p148
        %p231 = pneg %p145
        %p232 = scmp.lt.s32.totalorder %s20, 1
        %s233 = scalar_select %p232, %s20, 1
        %s234 = smul.addr %s233, 8
        %s235 = scalar_lea.vmem %s4, %s234
        %p236 = scmp.lt.s32.totalorder %s20, 1
        %s237 = scalar_select %p236, %s20, 1
        %s238 = smul.addr %s237, 8
        %s239 = scalar_lea.vmem %s0, %s238
        %p240 = scmp.lt.s32.totalorder %s20, 1
        %s241 = scalar_select %p240, %s20, 1
        %s242 = smul.addr %s241, 8
        %s243 = scalar_lea.vmem %s2, %s242
        %p244 = scmp.lt.s32.totalorder %s21, 0
        %s245 = scalar_select %p244, %s21, 0
        %s246 = scalar_lea.vmem %s3, %s245
        %p247 = scmp.lt.s32.totalorder %s20, 1
        %s248 = scalar_select %p247, %s20, 1
        %s249 = smul.addr %s248, 8
        %s250 = scalar_lea.vmem %s4, %s249
        %s251 = smul.u32 %s21, 128
        %s252 = scalar_lea.vmem [#allocation6], %s251
        %v253 = vld [vmem:[%s252] sm:$0xff]
        %v254 = vld [vmem:[%s252 + $0x8] sm:$0xff]
        %v255 = vld [vmem:[%s252 + $0x10] sm:$0xff]
        %v256 = vld [vmem:[%s252 + $0x18] sm:$0xff]
        %v257 = vld [vmem:[%s252 + $0x20] sm:$0xff]
        %v258 = vld [vmem:[%s252 + $0x28] sm:$0xff]
        %v259 = vld [vmem:[%s252 + $0x30] sm:$0xff]
        %v260 = vld [vmem:[%s252 + $0x38] sm:$0xff]
        %v261 = vld [vmem:[%s252 + $0x40] sm:$0xff]
        %v262 = vld [vmem:[%s252 + $0x48] sm:$0xff]
        %v263 = vld [vmem:[%s252 + $0x50] sm:$0xff]
        %v264 = vld [vmem:[%s252 + $0x58] sm:$0xff]
        %v265 = vld [vmem:[%s252 + $0x60] sm:$0xff]
        %v266 = vld [vmem:[%s252 + $0x68] sm:$0xff]
        %v267 = vld [vmem:[%s252 + $0x70] sm:$0xff]
        %v268 = vld [vmem:[%s252 + $0x78] sm:$0xff]
        %v269 = vld [vmem:[%s239] sm:$0xff]
        %270 = vmatprep.subr.mxu0 0.0
        %271 = vmatpush1.xpose.msra.mxu0 %v253
        %272 = vmatprep.subr.mxu0 0.0
        %273 = vmatpush1.xpose.msra.mxu0 %v254
        %274 = vmatprep.subr.mxu0 0.0
        %275 = vmatpush1.xpose.msra.mxu0 %v255
        %276 = vmatprep.subr.mxu0 0.0
        %277 = vmatpush1.xpose.msra.mxu0 %v256
        %278 = vmatprep.subr.mxu0 0.0
        %279 = vmatpush1.xpose.msra.mxu0 %v257
        %280 = vmatprep.subr.mxu0 0.0
        %281 = vmatpush1.xpose.msra.mxu0 %v258
        %282 = vmatprep.subr.mxu0 0.0
        %283 = vmatpush1.xpose.msra.mxu0 %v259
        %284 = vmatprep.subr.mxu0 0.0
        %285 = vmatpush1.xpose.msra.mxu0 %v260
        %286 = vmatprep.subr.mxu0 0.0
        %287 = vmatpush1.xpose.msra.mxu0 %v261
        %288 = vmatprep.subr.mxu0 0.0
        %289 = vmatpush1.xpose.msra.mxu0 %v262
        %290 = vmatprep.subr.mxu0 0.0
        %291 = vmatpush1.xpose.msra.mxu0 %v263
        %292 = vmatprep.subr.mxu0 0.0
        %293 = vmatpush1.xpose.msra.mxu0 %v264
        %294 = vmatprep.subr.mxu0 0.0
        %295 = vmatpush1.xpose.msra.mxu0 %v265
        %296 = vmatprep.subr.mxu0 0.0
        %297 = vmatpush1.xpose.msra.mxu0 %v266
        %298 = vmatprep.subr.mxu0 0.0
        %299 = vmatpush1.xpose.msra.mxu0 %v267
        %300 = vmatprep.subr.mxu0 0.0
        %301 = vmatpush1.xpose.msra.mxu0 %v268
        %302 = vmatprep.subr.mxu0 0.0
        %303 = vmatpush1.xpose.msra.mxu0 0.0
        %304 = vmatprep.subr.mxu0 0.0
        %305 = vmatpush1.xpose.msra.mxu0 0.0
        %306 = vmatprep.subr.mxu0 0.0
        %307 = vmatpush1.xpose.msra.mxu0 0.0
        %308 = vmatprep.subr.mxu0 0.0
        %309 = vmatpush1.xpose.msra.mxu0 0.0
        %310 = vmatprep.subr.mxu0 0.0
        %311 = vmatpush1.xpose.msra.mxu0 0.0
        %312 = vmatprep.subr.mxu0 0.0
        %313 = vmatpush1.xpose.msra.mxu0 0.0
        %314 = vmatprep.subr.mxu0 0.0
        %315 = vmatpush1.xpose.msra.mxu0 0.0
        %316 = vmatprep.subr.mxu0 0.0
        %317 = vmatpush1.xpose.msra.mxu0 0.0
        %318 = vmatprep.subr.mxu0 0.0
        %319 = vmatpush1.xpose.msra.mxu0 0.0
        %320 = vmatprep.subr.mxu0 0.0
        %321 = vmatpush1.xpose.msra.mxu0 0.0
        %322 = vmatprep.subr.mxu0 0.0
        %323 = vmatpush1.xpose.msra.mxu0 0.0
        %324 = vmatprep.subr.mxu0 0.0
        %325 = vmatpush1.xpose.msra.mxu0 0.0
        %326 = vmatprep.subr.mxu0 0.0
        %327 = vmatpush1.xpose.msra.mxu0 0.0
        %328 = vmatprep.subr.mxu0 0.0
        %329 = vmatpush1.xpose.msra.mxu0 0.0
        %330 = vmatprep.subr.mxu0 0.0
        %331 = vmatpush1.xpose.msra.mxu0 0.0
        %332 = vmatprep.subr.mxu0 0.0
        %333 = vmatpush1.xpose.msra.mxu0 0.0
        %334 = vmatprep.mubr.f32.mxu0 0.0
        %335 = vmatmul.mubr.f32.gmra.mrb[0].mxu0 %v269
        %v336 = vpop.f32.mrb[0].mxu0
        %v337 = vadd.f32 0.0, %v336
        %v338 = vpop.f32.mrb[0].mxu0
        %339 = vdwg.mxu0
        %v340 = vlaneseq
        %v341 = vand.u32 %v340, 127
        %v342 = vstv %s251
        %v343 = vadd.s32 %v342, %v341
        %s344 = smul.u32 %s20, 8
        %v345 = vlaneseq
        %v346 = vshrl.u32 %v345, 7
        %v347 = vstv %s344
        %v348 = vadd.s32 %v347, %v346
        %vm349 = vcmp.ne.s32.totalorder %v348, %v343
        %vm350 = vcmp.lt.s32.totalorder %v343, 16
        %v351 = vsel %vm350, 1, 0
        %vm352 = vcmp.eq.s32.totalorder %v351, 1
        %v353 = vsel %vm352, %v337, -3.4028235e+38
        %vm354 = vmand %vm352, %vm349
        %v355 = vld [vmem:[%s243] sm:$0xff]
        %v356 = vld [vmem:[%s246] sm:$0x1]
        %357 = vset.pattern.permute.xlu0 0
        %358 = vperm.xlu0 %357, %v355
        %v359 = vpop.permute.xlu0 %358
        %v360 = vlaneseq
        %v361 = vshrl.u32 %v360, 7
        %v362 = vsub.s32 0, %v361
        %v363 = vrot.slane %v356, %v362
        %vm364 = vcmp.eq.s32.totalorder %v359, %v363
        %p365 = scmp.eq.s32.totalorder %s21, 0
        // Predicated region
        $region41: #{tpu_custom_call.1} parent=35 // pred_check
          %p366 = pneg %p365
        $region42: #{tpu_custom_call.1} parent=35 // pred_check_branch
          %368 = sbr.rel (%p366) target = $region44
        $region43: #{tpu_custom_call.1} parent=35 // pred_region
          %vm369 = vcmask 7168
          %370 = vst.msk [vmem:[#allocation2] sm:$0xff] %vm369, -inf
          %371 = vst.msk [vmem:[#allocation3] sm:$0xff] %vm369, 0.0
          %372 = vst.msk [vmem:[#allocation4] sm:$0xff] %vm369, 0.0
          %373 = vst.msk [vmem:[#allocation5] sm:$0xff] %vm369, 0.0
        $region44: #{tpu_custom_call.1} parent=35 // pred_fallthru
          _
        %374 = vmax.xlane.f32.xlu0 %v353
        %v375 = vpop.xlane.xlu0 %374
        %v376 = vld [vmem:[#allocation2] sm:$0xff]
        %v377 = vmax.f32 %v376, %v375
        %379 = vset.pattern.permute.xlu0 0
        %380 = vperm.xlu0 %379, %v377
        %v381 = vpop.permute.xlu0 %380
        %v383 = vsub.f32 %v337, %v381
        %v384 = vmul.f32 %v383, 1.442695
        %v385 = vpow.pop %v384
        %v386 = vsel %vm354, %v385, 0.0
        %v387 = vsub.f32 %v376, %v377
        %v388 = vmul.f32 %v387, 1.442695
        %v389 = vpow.pop %v388
        %v390 = vld [vmem:[#allocation3] sm:$0xff]
        %v391 = vmul.f32 %v389, %v390
        %392 = vadd.xlane.f32.xlu0 %v386
        %v393 = vpop.xlane.xlu0 %392
        %v394 = vadd.f32 %v391, %v393
        %vm395 = vcmask 7168
        %396 = vst.msk [vmem:[#allocation3] sm:$0xff] %vm395, %v394
        %vm397 = vmand %vm364, %vm354
        %v398 = vld [vmem:[#allocation4] sm:$0xff]
        %v399 = vsel %vm397, %v337, 0.0
        %400 = vadd.xlane.f32.xlu0 %v399
        %v401 = vpop.xlane.xlu0 %400
        %v402 = vadd.f32 %v398, %v401
        %403 = vst.msk [vmem:[#allocation4] sm:$0xff] %vm395, %v402
        %v404 = vld [vmem:[#allocation5] sm:$0xff]
        %v405 = vsel %vm397, 1, 0
        %v406 = vcvt.s32.f32 %v405
        %407 = vadd.xlane.f32.xlu0 %v406
        %v408 = vpop.xlane.xlu0 %407
        %v409 = vadd.f32 %v404, %v408
        %410 = vst.msk [vmem:[#allocation5] sm:$0xff] %vm395, %v409
        %411 = vst.msk [vmem:[#allocation2] sm:$0xff] %vm395, %v377
        // Predicated region
        $region45: #{tpu_custom_call.1} parent=35 // pred_check
          %p412 = pneg %p365
        $region46: #{tpu_custom_call.1} parent=35 // pred_check_branch
          %414 = sbr.rel (%p412) target = $region48
        $region47: #{tpu_custom_call.1} parent=35 // pred_region
          %v415 = vld [vmem:[#allocation5] sm:$0xff]
          %vm416 = vcmp.lt.f32.partialorder %v415, 1e-06
          %v417 = vsel %vm416, 1.0, %v415
          %v418 = vld [vmem:[#allocation2] sm:$0xff]
          %v419 = vld [vmem:[#allocation3] sm:$0xff]
          %v420 = vlog2.pop %v419
          %v421 = vmul.f32 %v420, 0.6931472
          %v422 = vadd.f32 %v418, %v421
          %v423 = vld [vmem:[#allocation4] sm:$0xff]
          %v424 = vmul.f32 %v422, %v415
          %v425 = vsub.f32 %v423, %v424
          %v426 = vrcp.pop %v417
          %v427 = vmul.f32 %v425, %v426
          %v428 = vmul.f32 %v427, -1.0
          %429 = vst.msk [vmem:[%s250] sm:$0xff] %vm395, %v428
        $region48: #{tpu_custom_call.1} parent=35 // pred_fallthru
          _
        %p430 = scmp.lt.s32.totalorder %s20, 1
        %s431 = scalar_select %p430, %s20, 1
        %s432 = smul.addr %s431, 8
        %s433 = scalar_lea.vmem %s4, %s432
        // Predicated region
        $region49: #{tpu_custom_call.1} parent=35 // pred_check
          %p434 = pneg %p145
        $region50: #{tpu_custom_call.1} parent=35 // pred_check_branch
          %436 = sbr.rel (%p434) target = $region52
        $region51: #{tpu_custom_call.1} parent=35 // pred_region
          _
        $region52: #{tpu_custom_call.1} parent=35 // pred_fallthru
          _
      $region36: #{tpu_custom_call.1} parent=5 // pred_fallthru
        _
      %p437 = scmp.le.s32.totalorder 2, %s11
      // Predicated region
      $region53: #{tpu_custom_call.1} parent=5 // pred_check
        %p438 = pneg %p437
      $region54: #{tpu_custom_call.1} parent=5 // pred_check_branch
        %440 = sbr.rel (%p438) target = $region56
      $region55: #{tpu_custom_call.1} parent=5 // pred_region
        %s441 = ssub.s32 %s11, 2
        // Predicated region
        $region57: #{tpu_custom_call.1} parent=55 // pred_check
          %p442 = pneg %p151
        $region58: #{tpu_custom_call.1} parent=55 // pred_check_branch
          %444 = sbr.rel (%p442) target = $region60
        $region59: #{tpu_custom_call.1} parent=55 // pred_region
          %p445 = scmp.lt.s32.totalorder %s22, 1
          %s446 = scalar_select %p445, %s22, 1
          %s447 = smul.addr %s446, 8
          %s448 = scalar_lea.vmem %s4, %s447
        $region60: #{tpu_custom_call.1} parent=55 // pred_fallthru
          _
      $region56: #{tpu_custom_call.1} parent=5 // pred_fallthru
        _
    $region6: #{tpu_custom_call.1} parent=1 // loop_footer
      %s15 = sadd.s32 1, %s11
    $region7: #{tpu_custom_call.1} parent=1 // loop_footer_branch
      %10 = sbr.rel target = $region3
    $region8: #{tpu_custom_call.1} parent=1 // loop_exit
      _
    %449 = vsyncpa [#allocation7], 1
    %s450 = scalar_lea.sflag [#allocation7], 1
    %451 = vsyncpa %s450, 1

</llo_original>
